<compile_context>
chip_gen: v6e
topology: v6e:2x2x1
jax: 0.10.0
libtpu: 0.0.40
codegen_flags: <defaults>
</compile_context>

<pallas_src>
import jax
import jax.numpy as jnp
from jax import lax
from jax.experimental import pallas as pl
from jax.experimental.pallas import tpu as pltpu


# -----------------------------------------------------------------------------
# Fused kernel: hoisted input projection + bidirectional LSTM recurrence + MLP.
# -----------------------------------------------------------------------------
def _lstm_mlp_kernel(maxlen_ref, lens_ref, x_ref, w_in_ref, w_rec_ref, b_ref,
                     topics_ref, w1_ref, b1_ref, w2t_ref, b2_ref,
                     out_ref, ga_ref, gb_ref):
    B = lens_ref.shape[0]                      # padded batch (multiple of 8)
    H2, H8 = w_rec_ref.shape                   # (2H, 8H)
    H = H2 // 2

    n = maxlen_ref[0]                          # dynamic trip count (<= T)

    # ---- Hoisted input projection (one well-shaped MXU matmul) ----
    # w_in = [W_ih_fwd_expanded | W_ih_bwd_expanded]  -> (E, 16H)
    proj = jnp.dot(x_ref[...], w_in_ref[...],
                   preferred_element_type=jnp.float32)          # (T*B, 16H)
    ga_ref[...] = proj[:, :H8] + b_ref[...]    # fwd columns + (both) biases
    gb_ref[...] = proj[:, H8:]                 # bwd columns

    # ---- Loop-invariant values (hoisted; JAX does not CSE broadcasts) ----
    w_rec = w_rec_ref[...]                                       # (2H, 8H)
    lens2 = jnp.broadcast_to(lens_ref[...], (B, H2))             # (B, 2H)
    fwd2 = lax.broadcasted_iota(jnp.int32, (B, H2), 1) < H       # fwd lanes

    def step(i, carry):
        h, c = carry                                             # (B, 2H)
        t_f = i                                                  # forward time
        t_b = n - 1 - i                                          # backward time
        gin = (ga_ref[pl.ds(pl.multiple_of(t_f * B, B), B), :]
               + gb_ref[pl.ds(pl.multiple_of(t_b * B, B), B), :])  # (B, 8H)
        gates = jnp.dot(h, w_rec, preferred_element_type=jnp.float32) + gin
        i_g = jax.nn.sigmoid(gates[:, 0 * H2:1 * H2])
        f_g = jax.nn.sigmoid(gates[:, 1 * H2:2 * H2])
        g_g = jnp.tanh(gates[:, 2 * H2:3 * H2])
        o_g = jax.nn.sigmoid(gates[:, 3 * H2:4 * H2])
        c_new = f_g * c + i_g * g_g
        h_new = o_g * jnp.tanh(c_new)
        # Packed-sequence masking: fwd lanes live while t_f < len,
        # bwd lanes live while t_b < len (state frozen / still zero otherwise).
        live = jnp.where(fwd2, t_f, t_b) < lens2
        return jnp.where(live, h_new, h), jnp.where(live, c_new, c)

    zeros = jnp.zeros((B, H2), jnp.float32)
    h_fin, _ = lax.fori_loop(0, n, step, (zeros, zeros))         # h = [h_f|h_b]

    # ---- Fused MLP head: Linear -> ReLU -> Linear(., 1) ----
    hid = (jnp.dot(h_fin, w1_ref[:H2, :], preferred_element_type=jnp.float32)
           + jnp.dot(topics_ref[...], w1_ref[H2:, :],
                     preferred_element_type=jnp.float32)
           + b1_ref[...])
    hid = jnp.maximum(hid, 0.0)
    # N=1 output Linear as a VPU reduction (avoids an MXU drain for 1 lane).
    out_ref[...] = (jnp.sum(hid * w2t_ref[...], axis=1, keepdims=True)
                    + b2_ref[...])


# -----------------------------------------------------------------------------
# Wrapper: layout plumbing (padding, time-major gather, weight interleaving).
# -----------------------------------------------------------------------------
def _interleave_gate_cols(wf, wb, H):
    """(.., 4H) + (.., 4H) -> (.., 8H) columns [i_f,i_b,f_f,f_b,g_f,g_b,o_f,o_b]."""
    r = wf.shape[0]
    return jnp.stack([wf.reshape(r, 4, H), wb.reshape(r, 4, H)],
                     axis=2).reshape(r, 8 * H)


@jax.jit
def lstm_mlp_ensemble2_forward(text, text_len, topics1, topics2, params):
    B, T = text.shape
    E = params["embedding"].shape[1]
    H = params["whh_f"].shape[0]

    # Pad batch to a sublane multiple (f32 -> 8) so vregs / MXU rows are used.
    B_pad = max(8, ((B + 7) // 8) * 8)
    pad = B_pad - B
    text_p = jnp.pad(text, ((0, pad), (0, 0)))
    len_p = jnp.pad(jnp.minimum(text_len.astype(jnp.int32), T), ((0, pad),))
    topics_p = jnp.pad(jnp.concatenate([topics1, topics2], axis=1),
                       ((0, pad), (0, 0)))

    # Embedding gather directly in time-major order -> (T*B_pad, E).
    x2d = params["embedding"][text_p.T].reshape(T * B_pad, E)

    # Combined LSTM weights with interleaved gate columns.
    zf = jnp.zeros_like(params["wih_f"])
    zh = jnp.zeros_like(params["whh_f"])
    w_in = jnp.concatenate(
        [_interleave_gate_cols(params["wih_f"], zf, H),     # fwd -> first 8H
         _interleave_gate_cols(zf, params["wih_b"], H)],    # bwd -> last 8H
        axis=1)                                             # (E, 16H)
    w_rec = jnp.concatenate(
        [_interleave_gate_cols(params["whh_f"], zh, H),     # rows for h_fwd
         _interleave_gate_cols(zh, params["whh_b"], H)],    # rows for h_bwd
        axis=0)                                             # (2H, 8H) block-diag
    b_comb = _interleave_gate_cols(params["b_f"], params["b_b"], H)   # (1, 8H)

    maxlen = jnp.max(len_p).reshape(1).astype(jnp.int32)
    lens = len_p.reshape(B_pad, 1)

    vmem = pl.BlockSpec(memory_space=pltpu.MemorySpace.VMEM)
    smem = pl.BlockSpec(memory_space=pltpu.MemorySpace.SMEM)

    out = pl.pallas_call(
        _lstm_mlp_kernel,
        out_shape=jax.ShapeDtypeStruct((B_pad, 1), jnp.float32),
        in_specs=[smem, vmem, vmem, vmem, vmem, vmem, vmem,
                  vmem, vmem, vmem, vmem],
        out_specs=vmem,
        scratch_shapes=[pltpu.VMEM((T * B_pad, 8 * H), jnp.float32),
                        pltpu.VMEM((T * B_pad, 8 * H), jnp.float32)],
    )(maxlen, lens, x2d, w_in, w_rec, b_comb, topics_p,
      params["w1"], params["b1"], params["w2"].T, params["b2"])
    return out[:B]


# -----------------------------------------------------------------------------
# Pure-JAX reference (same packed bidirectional-LSTM + MLP semantics).
# -----------------------------------------------------------------------------
def reference_forward(text, text_len, topics1, topics2, params):
    emb = params["embedding"][text]                       # (B, T, E)
    B, T, _ = emb.shape
    H = params["whh_f"].shape[0]
    lens = text_len.astype(jnp.int32)

    def run(wih, whh, b, ts):
        def cell(carry, t):
            h, c = carry
            g = emb[:, t, :] @ wih + h @ whh + b
            i = jax.nn.sigmoid(g[:, :H])
            f = jax.nn.sigmoid(g[:, H:2 * H])
            gg = jnp.tanh(g[:, 2 * H:3 * H])
            o = jax.nn.sigmoid(g[:, 3 * H:])
            c_new = f * c + i * gg
            h_new = o * jnp.tanh(c_new)
            live = (t < lens)[:, None]
            return (jnp.where(live, h_new, h), jnp.where(live, c_new, c)), None
        init = (jnp.zeros((B, H), jnp.float32), jnp.zeros((B, H), jnp.float32))
        (h, _), _ = lax.scan(cell, init, ts)
        return h

    h_f = run(params["wih_f"], params["whh_f"], params["b_f"], jnp.arange(T))
    h_b = run(params["wih_b"], params["whh_b"], params["b_b"],
              jnp.arange(T)[::-1])
    feat = jnp.concatenate([h_f, h_b, topics1, topics2], axis=1)
    hid = jnp.maximum(feat @ params["w1"] + params["b1"], 0.0)
    return hid @ params["w2"] + params["b2"]


# -----------------------------------------------------------------------------
# Deterministic parameter construction (PyTorch-like per-direction layout;
# b_* corresponds to PyTorch's b_ih + b_hh summed).
# -----------------------------------------------------------------------------
def make_params(key, vocab_size, emb_dim, hidden_dim,
                num_topics, topic_dim, mlp_hidden):
    ks = jax.random.split(key, 12)
    H, E = hidden_dim, emb_dim
    mlp_in = 2 * hidden_dim + num_topics + topic_dim

    def init(k, shape, scale=0.1):
        return (scale * jax.random.normal(k, shape)).astype(jnp.float32)

    return {
        "embedding": init(ks[0], (vocab_size, E)),
        # LSTM weights, pre-transposed for (x @ W) layout; gate order i,f,g,o.
        "wih_f": init(ks[1], (E, 4 * H)),
        "whh_f": init(ks[2], (H, 4 * H)),
        "b_f": init(ks[3], (1, 4 * H)),
        "wih_b": init(ks[4], (E, 4 * H)),
        "whh_b": init(ks[5], (H, 4 * H)),
        "b_b": init(ks[6], (1, 4 * H)),
        # MLP.
        "w1": init(ks[7], (mlp_in, mlp_hidden)),
        "b1": init(ks[8], (1, mlp_hidden)),
        "w2": init(ks[9], (mlp_hidden, 1)),
        "b2": init(ks[10], (1, 1)),
    }


if __name__ == "__main__":
    B, T = 2, 8
    vocab_size, emb_dim, hidden_dim = 100, 16, 32
    num_topics, topic_dim, mlp_hidden = 16, 16, 32

    key = jax.random.PRNGKey(0)
    k_tok, k_t1, k_t2, k_param = jax.random.split(key, 4)

    text = jax.random.randint(k_tok, (B, T), 0, vocab_size, dtype=jnp.int32)
    text_len = jnp.array([T, T - 3], dtype=jnp.int32)          # variable lengths
    topics1 = jax.random.normal(k_t1, (B, num_topics), dtype=jnp.float32)
    topics2 = jax.random.normal(k_t2, (B, topic_dim), dtype=jnp.float32)

    params = make_params(k_param, vocab_size, emb_dim, hidden_dim,
                         num_topics, topic_dim, mlp_hidden)

    out = lstm_mlp_ensemble2_forward(text, text_len, topics1, topics2, params)
    out = jax.block_until_ready(out)
    assert out.shape == (B, 1) and out.dtype == jnp.float32

    ref = reference_forward(text, text_len, topics1, topics2, params)
    assert jnp.allclose(out, ref, atol=1e-3, rtol=1e-3), (out, ref)
    print("KERNEL_OK")
</pallas_src>

<mosaic_0001>
module attributes {stable_mosaic.version = 11 : i64} {
  func.func @_lstm_mlp_kernel(%arg0: memref<1xi32, #tpu.memory_space<smem>>, %arg1: memref<8x1xi32, #tpu.memory_space<vmem>>, %arg2: memref<64x16xf32, #tpu.memory_space<vmem>>, %arg3: memref<16x512xf32, #tpu.memory_space<vmem>>, %arg4: memref<64x256xf32, #tpu.memory_space<vmem>>, %arg5: memref<1x256xf32, #tpu.memory_space<vmem>>, %arg6: memref<8x32xf32, #tpu.memory_space<vmem>>, %arg7: memref<96x32xf32, #tpu.memory_space<vmem>>, %arg8: memref<1x32xf32, #tpu.memory_space<vmem>>, %arg9: memref<1x32xf32, #tpu.memory_space<vmem>>, %arg10: memref<1x1xf32, #tpu.memory_space<vmem>>, %arg11: memref<8x1xf32, #tpu.memory_space<vmem>>, %arg12: memref<64x256xf32, #tpu.memory_space<vmem>>, %arg13: memref<64x256xf32, #tpu.memory_space<vmem>>) attributes {dimension_semantics = [], scalar_prefetch = 0 : i64, scratch_operands = 2 : i64, tpu.core_type = #tpu.core_type<tc>} {
    %c0 = arith.constant 0 : index
    %0 = memref.load %arg0[%c0] : memref<1xi32, #tpu.memory_space<smem>>
    %c0_0 = arith.constant 0 : index
    %c0_1 = arith.constant 0 : index
    %1 = vector.load %arg2[%c0_0, %c0_1] : memref<64x16xf32, #tpu.memory_space<vmem>>, vector<64x16xf32>
    %c0_2 = arith.constant 0 : index
    %c0_3 = arith.constant 0 : index
    %2 = vector.load %arg3[%c0_2, %c0_3] : memref<16x512xf32, #tpu.memory_space<vmem>>, vector<16x512xf32>
    %cst = arith.constant dense<0.000000e+00> : vector<64x512xf32>
    %3 = tpu.matmul %1, %2, %cst {dimension_numbers = #tpu.dot_dimension_numbers<[1], [0], [0], [1], [0, 0, 1, 1], [], []>} : vector<64x16xf32>, vector<16x512xf32>, vector<64x512xf32> -> vector<64x512xf32>
    %4 = vector.extract_strided_slice %3 {offsets = [0, 0], sizes = [64, 256], strides = [1, 1]} : vector<64x512xf32> to vector<64x256xf32>
    %c0_4 = arith.constant 0 : index
    %c0_5 = arith.constant 0 : index
    %5 = vector.load %arg5[%c0_4, %c0_5] : memref<1x256xf32, #tpu.memory_space<vmem>>, vector<1x256xf32>
    %6 = vector.broadcast %5 : vector<1x256xf32> to vector<64x256xf32>
    %7 = arith.addf %4, %6 : vector<64x256xf32>
    %c0_6 = arith.constant 0 : index
    %c0_7 = arith.constant 0 : index
    %8 = vector.load %arg12[%c0_6, %c0_7] : memref<64x256xf32, #tpu.memory_space<vmem>>, vector<64x256xf32>
    tpu.vector_store %arg12[%c0_6, %c0_7], %7 {strides = array<i32>} : memref<64x256xf32, #tpu.memory_space<vmem>>, vector<64x256xf32>,
    %9 = vector.extract_strided_slice %3 {offsets = [0, 256], sizes = [64, 256], strides = [1, 1]} : vector<64x512xf32> to vector<64x256xf32>
    %c0_8 = arith.constant 0 : index
    %c0_9 = arith.constant 0 : index
    %10 = vector.load %arg13[%c0_8, %c0_9] : memref<64x256xf32, #tpu.memory_space<vmem>>, vector<64x256xf32>
    tpu.vector_store %arg13[%c0_8, %c0_9], %9 {strides = array<i32>} : memref<64x256xf32, #tpu.memory_space<vmem>>, vector<64x256xf32>,
    %c0_10 = arith.constant 0 : index
    %c0_11 = arith.constant 0 : index
    %11 = vector.load %arg4[%c0_10, %c0_11] : memref<64x256xf32, #tpu.memory_space<vmem>>, vector<64x256xf32>
    %c0_12 = arith.constant 0 : index
    %c0_13 = arith.constant 0 : index
    %12 = vector.load %arg1[%c0_12, %c0_13] : memref<8x1xi32, #tpu.memory_space<vmem>>, vector<8x1xi32>
    %13 = vector.shape_cast %12 : vector<8x1xi32> to vector<8x1xi32>
    %14 = vector.broadcast %13 : vector<8x1xi32> to vector<8x64xi32>
    %15 = tpu.iota {dimensions = array<i32: 1>} : vector<8x64xi32>
    %c32_i32 = arith.constant 32 : i32
    %16 = vector.broadcast %c32_i32 : i32 to vector<8x64xi32>
    %17 = arith.cmpi slt, %15, %16 : vector<8x64xi32>
    %cst_14 = arith.constant 0.000000e+00 : f32
    %18 = vector.broadcast %cst_14 : f32 to vector<8x64xf32>
    %c0_i32 = arith.constant 0 : i32
    %19 = arith.subi %0, %c0_i32 : i32
    %20 = arith.addi %c0_i32, %19 : i32
    %c1_i32 = arith.constant 1 : i32
    %21:2 = scf.for %arg14 = %c0_i32 to %20 step %c1_i32 iter_args(%arg15 = %18, %arg16 = %18) -> (vector<8x64xf32>, vector<8x64xf32>)  : i32 {
      %c1_i32_32 = arith.constant 1 : i32
      %42 = arith.subi %0, %c1_i32_32 : i32
      %43 = arith.subi %42, %arg14 : i32
      %c8_i32 = arith.constant 8 : i32
      %44 = arith.muli %arg14, %c8_i32 : i32
      %45 = tpu.assume_multiple %44, 8 : i32
      %46 = arith.index_cast %45 : i32 to index
      %c0_33 = arith.constant 0 : index
      %47 = vector.load %arg12[%46, %c0_33] : memref<64x256xf32, #tpu.memory_space<vmem>>, vector<8x256xf32>
      %c8_i32_34 = arith.constant 8 : i32
      %48 = arith.muli %43, %c8_i32_34 : i32
      %49 = tpu.assume_multiple %48, 8 : i32
      %50 = arith.index_cast %49 : i32 to index
      %c0_35 = arith.constant 0 : index
      %51 = vector.load %arg13[%50, %c0_35] : memref<64x256xf32, #tpu.memory_space<vmem>>, vector<8x256xf32>
      %52 = arith.addf %47, %51 : vector<8x256xf32>
      %cst_36 = arith.constant dense<0.000000e+00> : vector<8x256xf32>
      %53 = tpu.matmul %arg15, %11, %cst_36 {dimension_numbers = #tpu.dot_dimension_numbers<[1], [0], [0], [1], [0, 0, 1, 1], [], []>} : vector<8x64xf32>, vector<64x256xf32>, vector<8x256xf32> -> vector<8x256xf32>
      %54 = arith.addf %53, %52 : vector<8x256xf32>
      %55 = vector.extract_strided_slice %54 {offsets = [0, 0], sizes = [8, 64], strides = [1, 1]} : vector<8x256xf32> to vector<8x64xf32>
      %56 = arith.negf %55 : vector<8x64xf32>
      %57 = math.exp %56 : vector<8x64xf32>
      %cst_37 = arith.constant 1.000000e+00 : f32
      %58 = vector.broadcast %cst_37 : f32 to vector<8x64xf32>
      %59 = arith.addf %58, %57 : vector<8x64xf32>
      %60 = arith.divf %58, %59 : vector<8x64xf32>
      %61 = vector.extract_strided_slice %54 {offsets = [0, 64], sizes = [8, 64], strides = [1, 1]} : vector<8x256xf32> to vector<8x64xf32>
      %62 = arith.negf %61 : vector<8x64xf32>
      %63 = math.exp %62 : vector<8x64xf32>
      %cst_38 = arith.constant 1.000000e+00 : f32
      %64 = vector.broadcast %cst_38 : f32 to vector<8x64xf32>
      %65 = arith.addf %64, %63 : vector<8x64xf32>
      %66 = arith.divf %64, %65 : vector<8x64xf32>
      %67 = vector.extract_strided_slice %54 {offsets = [0, 128], sizes = [8, 64], strides = [1, 1]} : vector<8x256xf32> to vector<8x64xf32>
      %68 = math.tanh %67 : vector<8x64xf32>
      %69 = vector.extract_strided_slice %54 {offsets = [0, 192], sizes = [8, 64], strides = [1, 1]} : vector<8x256xf32> to vector<8x64xf32>
      %70 = arith.negf %69 : vector<8x64xf32>
      %71 = math.exp %70 : vector<8x64xf32>
      %cst_39 = arith.constant 1.000000e+00 : f32
      %72 = vector.broadcast %cst_39 : f32 to vector<8x64xf32>
      %73 = arith.addf %72, %71 : vector<8x64xf32>
      %74 = arith.divf %72, %73 : vector<8x64xf32>
      %75 = arith.mulf %66, %arg16 : vector<8x64xf32>
      %76 = arith.mulf %60, %68 : vector<8x64xf32>
      %77 = arith.addf %75, %76 : vector<8x64xf32>
      %78 = math.tanh %77 : vector<8x64xf32>
      %79 = arith.mulf %74, %78 : vector<8x64xf32>
      %80 = vector.broadcast %arg14 : i32 to vector<8x64xi32>
      %81 = vector.broadcast %43 : i32 to vector<8x64xi32>
      %82 = arith.select %17, %80, %81 : vector<8x64xi1>, vector<8x64xi32>
      %83 = arith.cmpi slt, %82, %14 : vector<8x64xi32>
      %84 = arith.select %83, %79, %arg15 : vector<8x64xi1>, vector<8x64xf32>
      %85 = arith.select %83, %77, %arg16 : vector<8x64xi1>, vector<8x64xf32>
      scf.yield %84, %85 : vector<8x64xf32>, vector<8x64xf32>
    }
    %c0_15 = arith.constant 0 : index
    %c0_16 = arith.constant 0 : index
    %22 = vector.load %arg7[%c0_15, %c0_16] : memref<96x32xf32, #tpu.memory_space<vmem>>, vector<64x32xf32>
    %cst_17 = arith.constant dense<0.000000e+00> : vector<8x32xf32>
    %23 = tpu.matmul %21#0, %22, %cst_17 {dimension_numbers = #tpu.dot_dimension_numbers<[1], [0], [0], [1], [0, 0, 1, 1], [], []>} : vector<8x64xf32>, vector<64x32xf32>, vector<8x32xf32> -> vector<8x32xf32>
    %c0_18 = arith.constant 0 : index
    %c0_19 = arith.constant 0 : index
    %24 = vector.load %arg6[%c0_18, %c0_19] : memref<8x32xf32, #tpu.memory_space<vmem>>, vector<8x32xf32>
    %c64 = arith.constant 64 : index
    %c0_20 = arith.constant 0 : index
    %25 = vector.load %arg7[%c64, %c0_20] : memref<96x32xf32, #tpu.memory_space<vmem>>, vector<32x32xf32>
    %cst_21 = arith.constant dense<0.000000e+00> : vector<8x32xf32>
    %26 = tpu.matmul %24, %25, %cst_21 {dimension_numbers = #tpu.dot_dimension_numbers<[1], [0], [0], [1], [0, 0, 1, 1], [], []>} : vector<8x32xf32>, vector<32x32xf32>, vector<8x32xf32> -> vector<8x32xf32>
    %27 = arith.addf %23, %26 : vector<8x32xf32>
    %c0_22 = arith.constant 0 : index
    %c0_23 = arith.constant 0 : index
    %28 = vector.load %arg8[%c0_22, %c0_23] : memref<1x32xf32, #tpu.memory_space<vmem>>, vector<1x32xf32>
    %29 = vector.broadcast %28 : vector<1x32xf32> to vector<8x32xf32>
    %30 = arith.addf %27, %29 : vector<8x32xf32>
    %cst_24 = arith.constant 0.000000e+00 : f32
    %31 = vector.broadcast %cst_24 : f32 to vector<8x32xf32>
    %32 = arith.maximumf %30, %31 : vector<8x32xf32>
    %c0_25 = arith.constant 0 : index
    %c0_26 = arith.constant 0 : index
    %33 = vector.load %arg9[%c0_25, %c0_26] : memref<1x32xf32, #tpu.memory_space<vmem>>, vector<1x32xf32>
    %34 = vector.broadcast %33 : vector<1x32xf32> to vector<8x32xf32>
    %35 = arith.mulf %32, %34 : vector<8x32xf32>
    %cst_27 = arith.constant dense<0.000000e+00> : vector<8xf32>
    %36 = vector.multi_reduction <add>, %35, %cst_27 [1] : vector<8x32xf32> to vector<8xf32>
    %37 = vector.shape_cast %36 : vector<8xf32> to vector<8x1xf32>
    %c0_28 = arith.constant 0 : index
    %c0_29 = arith.constant 0 : index
    %38 = vector.load %arg10[%c0_28, %c0_29] : memref<1x1xf32, #tpu.memory_space<vmem>>, vector<1x1xf32>
    %39 = vector.broadcast %38 : vector<1x1xf32> to vector<8x1xf32>
    %40 = arith.addf %37, %39 : vector<8x1xf32>
    %c0_30 = arith.constant 0 : index
    %c0_31 = arith.constant 0 : index
    %41 = vector.load %arg11[%c0_30, %c0_31] : memref<8x1xf32, #tpu.memory_space<vmem>>, vector<8x1xf32>
    tpu.vector_store %arg11[%c0_30, %c0_31], %40 {strides = array<i32>} : memref<8x1xf32, #tpu.memory_space<vmem>>, vector<8x1xf32>,
    return
  }
}

</mosaic_0001>

<llo_original>
// kernel: lstm_mlp_ensemble2_forward.1
$region0: #{lstm_mlp_ensemble2_forward.1}
  #allocation0 [shape = 'u32[]', space=smem, size = 0x4, offset = 0x4, fixed_abs, tag = 'smem constant byte address 0x4 - core index']
  #allocation1 [shape = 'u32[144,128]{1,0:T(1,128)}', space=vmem, size = 0x12000, scoped, tag = 'internal scratch']
  #allocation2 [shape = 'f32[64,256]{1,0:T(8,128)}', space=vmem, size = 0x10000, scoped, tag = 'scratch operand']
  #allocation3 [shape = 'f32[64,256]{1,0:T(8,128)}', space=vmem, size = 0x10000, scoped, tag = 'scratch operand']
  #allocation4 [shape = 's32[1]{0:T(128)S(6)}', space=smem, size = 0x200, scoped, tag = 'scoped memory for lstm_mlp_ensemble2_forward.1']
  #allocation5 [shape = 'f32[1,1]{1,0:T(1,128)S(1)}', space=vmem, size = 0x200, scoped, tag = 'scoped memory for lstm_mlp_ensemble2_forward.1']
  %s0 = inlined_call_operand.<no memory space> [shape: s32[1], index: 0, kind: input, shape index: {}]
  %s1 = inlined_call_operand.vmem [shape: s32[8,1], index: 1, kind: input, shape index: {}]
  %s2 = inlined_call_operand.vmem [shape: f32[64,16], index: 2, kind: input, shape index: {}]
  %s3 = inlined_call_operand.vmem [shape: f32[16,512], index: 3, kind: input, shape index: {}]
  %s4 = inlined_call_operand.vmem [shape: f32[64,256], index: 4, kind: input, shape index: {}]
  %s5 = inlined_call_operand.vmem [shape: f32[1,256], index: 5, kind: input, shape index: {}]
  %s6 = inlined_call_operand.vmem [shape: f32[8,32], index: 6, kind: input, shape index: {}]
  %s7 = inlined_call_operand.vmem [shape: f32[96,32], index: 7, kind: input, shape index: {}]
  %s8 = inlined_call_operand.vmem [shape: f32[1,32], index: 8, kind: input, shape index: {}]
  %s9 = inlined_call_operand.vmem [shape: f32[1,32], index: 9, kind: input, shape index: {}]
  %s10 = inlined_call_operand.<no memory space> [shape: f32[1,1], index: 10, kind: input, shape index: {}]
  %s11 = inlined_call_operand.vmem [shape: f32[8,1], index: 11, kind: output, shape index: {}]
  %s12 = sld [smem:[#allocation0]]
  $region61: #{lstm_mlp_ensemble2_forward.1} parent=0
    _
  %s14 = ssub.s32 1, %s12
  %s15 = scalar_select 0, %s14, %s12
  %16 = sst [smem:[#allocation4]] %s0
  %v17 = vstv %s10
  %18 = vst [vmem:[#allocation5] sm:$0x1] %v17
  // Predicated region
  $region2: #{lstm_mlp_ensemble2_forward.1} parent=0 // pred_check
    _
  $region3: #{lstm_mlp_ensemble2_forward.1} parent=0 // pred_check_branch
    %20 = sbr.rel (0) target = $region5
  $region4: #{lstm_mlp_ensemble2_forward.1} parent=0 // pred_region
    _
  $region5: #{lstm_mlp_ensemble2_forward.1} parent=0 // pred_fallthru
    _
  // Predicated region
  $region6: #{lstm_mlp_ensemble2_forward.1} parent=0 // pred_check
    _
  $region7: #{lstm_mlp_ensemble2_forward.1} parent=0 // pred_check_branch
    %22 = sbr.rel (0) target = $region9
  $region8: #{lstm_mlp_ensemble2_forward.1} parent=0 // pred_region
    _
  $region9: #{lstm_mlp_ensemble2_forward.1} parent=0 // pred_fallthru
    _
  // Predicated region
  $region10: #{lstm_mlp_ensemble2_forward.1} parent=0 // pred_check
    _
  $region11: #{lstm_mlp_ensemble2_forward.1} parent=0 // pred_check_branch
    %24 = sbr.rel (0) target = $region13
  $region12: #{lstm_mlp_ensemble2_forward.1} parent=0 // pred_region
    _
  $region13: #{lstm_mlp_ensemble2_forward.1} parent=0 // pred_fallthru
    _
  // Predicated region
  $region14: #{lstm_mlp_ensemble2_forward.1} parent=0 // pred_check
    _
  $region15: #{lstm_mlp_ensemble2_forward.1} parent=0 // pred_check_branch
    %26 = sbr.rel (0) target = $region17
  $region16: #{lstm_mlp_ensemble2_forward.1} parent=0 // pred_region
    _
  $region17: #{lstm_mlp_ensemble2_forward.1} parent=0 // pred_fallthru
    _
  // Predicated region
  $region18: #{lstm_mlp_ensemble2_forward.1} parent=0 // pred_check
    _
  $region19: #{lstm_mlp_ensemble2_forward.1} parent=0 // pred_check_branch
    %28 = sbr.rel (0) target = $region21
  $region20: #{lstm_mlp_ensemble2_forward.1} parent=0 // pred_region
    _
  $region21: #{lstm_mlp_ensemble2_forward.1} parent=0 // pred_fallthru
    _
  // Predicated region
  $region22: #{lstm_mlp_ensemble2_forward.1} parent=0 // pred_check
    _
  $region23: #{lstm_mlp_ensemble2_forward.1} parent=0 // pred_check_branch
    %30 = sbr.rel (0) target = $region25
  $region24: #{lstm_mlp_ensemble2_forward.1} parent=0 // pred_region
    _
  $region25: #{lstm_mlp_ensemble2_forward.1} parent=0 // pred_fallthru
    _
  // Predicated region
  $region26: #{lstm_mlp_ensemble2_forward.1} parent=0 // pred_check
    _
  $region27: #{lstm_mlp_ensemble2_forward.1} parent=0 // pred_check_branch
    %32 = sbr.rel (0) target = $region29
  $region28: #{lstm_mlp_ensemble2_forward.1} parent=0 // pred_region
    _
  $region29: #{lstm_mlp_ensemble2_forward.1} parent=0 // pred_fallthru
    _
  // Predicated region
  $region30: #{lstm_mlp_ensemble2_forward.1} parent=0 // pred_check
    _
  $region31: #{lstm_mlp_ensemble2_forward.1} parent=0 // pred_check_branch
    %34 = sbr.rel (0) target = $region33
  $region32: #{lstm_mlp_ensemble2_forward.1} parent=0 // pred_region
    _
  $region33: #{lstm_mlp_ensemble2_forward.1} parent=0 // pred_fallthru
    _
  // Predicated region
  $region34: #{lstm_mlp_ensemble2_forward.1} parent=0 // pred_check
    _
  $region35: #{lstm_mlp_ensemble2_forward.1} parent=0 // pred_check_branch
    %36 = sbr.rel (0) target = $region37
  $region36: #{lstm_mlp_ensemble2_forward.1} parent=0 // pred_region
    _
  $region37: #{lstm_mlp_ensemble2_forward.1} parent=0 // pred_fallthru
    _
  // Predicated region
  $region38: #{lstm_mlp_ensemble2_forward.1} parent=0 // pred_check
    _
  $region39: #{lstm_mlp_ensemble2_forward.1} parent=0 // pred_check_branch
    %38 = sbr.rel (0) target = $region41
  $region40: #{lstm_mlp_ensemble2_forward.1} parent=0 // pred_region
    _
  $region41: #{lstm_mlp_ensemble2_forward.1} parent=0 // pred_fallthru
    _
  // Predicated region
  $region42: #{lstm_mlp_ensemble2_forward.1} parent=0 // pred_check
    _
  $region43: #{lstm_mlp_ensemble2_forward.1} parent=0 // pred_check_branch
    %40 = sbr.rel (0) target = $region45
  $region44: #{lstm_mlp_ensemble2_forward.1} parent=0 // pred_region
    _
  $region45: #{lstm_mlp_ensemble2_forward.1} parent=0 // pred_fallthru
    _
  %s41 = sld [smem:[#allocation4]]
  %v42 = vld [vmem:[%s2] sm:$0xff]
  %v43 = vld [vmem:[%s2 + $0x8] sm:$0xff]
  %v44 = vld [vmem:[%s2 + $0x10] sm:$0xff]
  %v45 = vld [vmem:[%s2 + $0x18] sm:$0xff]
  %v46 = vld [vmem:[%s2 + $0x20] sm:$0xff]
  %v47 = vld [vmem:[%s2 + $0x28] sm:$0xff]
  %v48 = vld [vmem:[%s2 + $0x30] sm:$0xff]
  %v49 = vld [vmem:[%s2 + $0x38] sm:$0xff]
  %v50 = vld [vmem:[%s3] sm:$0xff]
  %v51 = vld [vmem:[%s3 + $0x8] sm:$0xff]
  %v52 = vld [vmem:[%s3 + $0x10] sm:$0xff]
  %v53 = vld [vmem:[%s3 + $0x18] sm:$0xff]
  %v54 = vld [vmem:[%s3 + $0x20] sm:$0xff]
  %v55 = vld [vmem:[%s3 + $0x28] sm:$0xff]
  %v56 = vld [vmem:[%s3 + $0x30] sm:$0xff]
  %v57 = vld [vmem:[%s3 + $0x38] sm:$0xff]
  %vm58 = vcmask 130048
  %v60 = vsel %vm58, %v42, 0
  %v63 = vsel %vm58, %v43, 0
  %v66 = vsel %vm58, %v44, 0
  %v69 = vsel %vm58, %v45, 0
  %v72 = vsel %vm58, %v46, 0
  %v75 = vsel %vm58, %v47, 0
  %v78 = vsel %vm58, %v48, 0
  %v81 = vsel %vm58, %v49, 0
  %83 = vmatprep.subr.mxu0 0.0
  %84 = vmatpush1.msra.mxu0 0.0
  %85 = vmatprep.subr.mxu0 0.0
  %86 = vmatpush1.msra.mxu0 0.0
  %87 = vmatprep.subr.mxu0 0.0
  %88 = vmatpush1.msra.mxu0 0.0
  %89 = vmatprep.subr.mxu0 0.0
  %90 = vmatpush1.msra.mxu0 0.0
  %91 = vmatprep.subr.mxu0 0.0
  %92 = vmatpush1.msra.mxu0 0.0
  %93 = vmatprep.subr.mxu0 0.0
  %94 = vmatpush1.msra.mxu0 0.0
  %95 = vmatprep.subr.mxu0 0.0
  %96 = vmatpush1.msra.mxu0 0.0
  %97 = vmatprep.subr.mxu0 0.0
  %98 = vmatpush1.msra.mxu0 0.0
  %99 = vmatprep.subr.mxu0 0.0
  %100 = vmatpush1.msra.mxu0 0.0
  %101 = vmatprep.subr.mxu0 0.0
  %102 = vmatpush1.msra.mxu0 0.0
  %103 = vmatprep.subr.mxu0 0.0
  %104 = vmatpush1.msra.mxu0 0.0
  %105 = vmatprep.subr.mxu0 0.0
  %106 = vmatpush1.msra.mxu0 0.0
  %107 = vmatprep.subr.mxu0 0.0
  %108 = vmatpush1.msra.mxu0 0.0
  %109 = vmatprep.subr.mxu0 0.0
  %110 = vmatpush1.msra.mxu0 0.0
  %111 = vmatprep.subr.mxu0 %v55
  %112 = vmatpush1.msra.mxu0 %v54
  %113 = vmatprep.subr.mxu0 %v51
  %114 = vmatpush1.msra.mxu0 %v50
  %115 = vmatprep.subr.mxu0 0.0
  %116 = vmatpush2.msra.mxu0 0.0
  %117 = vmatprep.subr.mxu0 0.0
  %118 = vmatpush2.msra.mxu0 0.0
  %119 = vmatprep.subr.mxu0 0.0
  %120 = vmatpush2.msra.mxu0 0.0
  %121 = vmatprep.subr.mxu0 0.0
  %122 = vmatpush2.msra.mxu0 0.0
  %123 = vmatprep.subr.mxu0 0.0
  %124 = vmatpush2.msra.mxu0 0.0
  %125 = vmatprep.subr.mxu0 0.0
  %126 = vmatpush2.msra.mxu0 0.0
  %127 = vmatprep.subr.mxu0 0.0
  %128 = vmatpush2.msra.mxu0 0.0
  %129 = vmatprep.subr.mxu0 0.0
  %130 = vmatpush2.msra.mxu0 0.0
  %131 = vmatprep.subr.mxu0 0.0
  %132 = vmatpush2.msra.mxu0 0.0
  %133 = vmatprep.subr.mxu0 0.0
  %134 = vmatpush2.msra.mxu0 0.0
  %135 = vmatprep.subr.mxu0 0.0
  %136 = vmatpush2.msra.mxu0 0.0
  %137 = vmatprep.subr.mxu0 0.0
  %138 = vmatpush2.msra.mxu0 0.0
  %139 = vmatprep.subr.mxu0 0.0
  %140 = vmatpush2.msra.mxu0 0.0
  %141 = vmatprep.subr.mxu0 0.0
  %142 = vmatpush2.msra.mxu0 0.0
  %143 = vmatprep.subr.mxu0 0.0
  %144 = vmatpush2.msra.mxu0 0.0
  %145 = vmatprep.subr.mxu0 0.0
  %146 = vmatpush2.msra.mxu0 0.0
  %147 = vmatprep.mubr.f32.mxu0 0.0
  %148 = vmatmul.mubr.f32.gmra.mxu0 %v60
  %v149 = vpop.f32.mrf.mxu0
  %v150 = vadd.f32 0.0, %v149
  %v151 = vpop.f32.mrf.mxu0
  %v152 = vadd.f32 0.0, %v151
  %153 = vmatprep.mubr.f32.mxu0 0.0
  %154 = vmatmul.mubr.f32.gmra.mxu0 %v63
  %v155 = vpop.f32.mrf.mxu0
  %v156 = vadd.f32 0.0, %v155
  %v157 = vpop.f32.mrf.mxu0
  %v158 = vadd.f32 0.0, %v157
  %159 = vmatprep.mubr.f32.mxu0 0.0
  %160 = vmatmul.mubr.f32.gmra.mxu0 %v66
  %v161 = vpop.f32.mrf.mxu0
  %v162 = vadd.f32 0.0, %v161
  %v163 = vpop.f32.mrf.mxu0
  %v164 = vadd.f32 0.0, %v163
  %165 = vmatprep.mubr.f32.mxu0 0.0
  %166 = vmatmul.mubr.f32.gmra.mxu0 %v69
  %v167 = vpop.f32.mrf.mxu0
  %v168 = vadd.f32 0.0, %v167
  %v169 = vpop.f32.mrf.mxu0
  %v170 = vadd.f32 0.0, %v169
  %171 = vmatprep.mubr.f32.mxu0 0.0
  %172 = vmatmul.mubr.f32.gmra.mxu0 %v72
  %v173 = vpop.f32.mrf.mxu0
  %v174 = vadd.f32 0.0, %v173
  %v175 = vpop.f32.mrf.mxu0
  %v176 = vadd.f32 0.0, %v175
  %177 = vmatprep.mubr.f32.mxu0 0.0
  %178 = vmatmul.mubr.f32.gmra.mxu0 %v75
  %v179 = vpop.f32.mrf.mxu0
  %v180 = vadd.f32 0.0, %v179
  %v181 = vpop.f32.mrf.mxu0
  %v182 = vadd.f32 0.0, %v181
  %183 = vmatprep.mubr.f32.mxu0 0.0
  %184 = vmatmul.mubr.f32.gmra.mxu0 %v78
  %v185 = vpop.f32.mrf.mxu0
  %v186 = vadd.f32 0.0, %v185
  %v187 = vpop.f32.mrf.mxu0
  %v188 = vadd.f32 0.0, %v187
  %189 = vmatprep.mubr.f32.mxu0 0.0
  %190 = vmatmul.mubr.f32.gmra.mxu0 %v81
  %v191 = vpop.f32.mrf.mxu0
  %v192 = vadd.f32 0.0, %v191
  %v193 = vpop.f32.mrf.mxu0
  %v194 = vadd.f32 0.0, %v193
  %195 = vdwg.mxu0
  %196 = vmatprep.subr.mxu0 0.0
  %197 = vmatpush1.msra.mxu0 0.0
  %198 = vmatprep.subr.mxu0 0.0
  %199 = vmatpush1.msra.mxu0 0.0
  %200 = vmatprep.subr.mxu0 0.0
  %201 = vmatpush1.msra.mxu0 0.0
  %202 = vmatprep.subr.mxu0 0.0
  %203 = vmatpush1.msra.mxu0 0.0
  %204 = vmatprep.subr.mxu0 0.0
  %205 = vmatpush1.msra.mxu0 0.0
  %206 = vmatprep.subr.mxu0 0.0
  %207 = vmatpush1.msra.mxu0 0.0
  %208 = vmatprep.subr.mxu0 0.0
  %209 = vmatpush1.msra.mxu0 0.0
  %210 = vmatprep.subr.mxu0 0.0
  %211 = vmatpush1.msra.mxu0 0.0
  %212 = vmatprep.subr.mxu0 0.0
  %213 = vmatpush1.msra.mxu0 0.0
  %214 = vmatprep.subr.mxu0 0.0
  %215 = vmatpush1.msra.mxu0 0.0
  %216 = vmatprep.subr.mxu0 0.0
  %217 = vmatpush1.msra.mxu0 0.0
  %218 = vmatprep.subr.mxu0 0.0
  %219 = vmatpush1.msra.mxu0 0.0
  %220 = vmatprep.subr.mxu0 0.0
  %221 = vmatpush1.msra.mxu0 0.0
  %222 = vmatprep.subr.mxu0 0.0
  %223 = vmatpush1.msra.mxu0 0.0
  %224 = vmatprep.subr.mxu0 %v57
  %225 = vmatpush1.msra.mxu0 %v56
  %226 = vmatprep.subr.mxu0 %v53
  %227 = vmatpush1.msra.mxu0 %v52
  %228 = vmatprep.subr.mxu0 0.0
  %229 = vmatpush2.msra.mxu0 0.0
  %230 = vmatprep.subr.mxu0 0.0
  %231 = vmatpush2.msra.mxu0 0.0
  %232 = vmatprep.subr.mxu0 0.0
  %233 = vmatpush2.msra.mxu0 0.0
  %234 = vmatprep.subr.mxu0 0.0
  %235 = vmatpush2.msra.mxu0 0.0
  %236 = vmatprep.subr.mxu0 0.0
  %237 = vmatpush2.msra.mxu0 0.0
  %238 = vmatprep.subr.mxu0 0.0
  %239 = vmatpush2.msra.mxu0 0.0
  %240 = vmatprep.subr.mxu0 0.0
  %241 = vmatpush2.msra.mxu0 0.0
  %242 = vmatprep.subr.mxu0 0.0
  %243 = vmatpush2.msra.mxu0 0.0
  %244 = vmatprep.subr.mxu0 0.0
  %245 = vmatpush2.msra.mxu0 0.0
  %246 = vmatprep.subr.mxu0 0.0
  %247 = vmatpush2.msra.mxu0 0.0
  %248 = vmatprep.subr.mxu0 0.0
  %249 = vmatpush2.msra.mxu0 0.0
  %250 = vmatprep.subr.mxu0 0.0
  %251 = vmatpush2.msra.mxu0 0.0
  %252 = vmatprep.subr.mxu0 0.0
  %253 = vmatpush2.msra.mxu0 0.0
  %254 = vmatprep.subr.mxu0 0.0
  %255 = vmatpush2.msra.mxu0 0.0
  %256 = vmatprep.subr.mxu0 0.0
  %257 = vmatpush2.msra.mxu0 0.0
  %258 = vmatprep.subr.mxu0 0.0
  %259 = vmatpush2.msra.mxu0 0.0
  %260 = vmatprep.mubr.f32.mxu0 0.0
  %261 = vmatmul.mubr.f32.gmra.mxu0 %v60
  %v262 = vpop.f32.mrf.mxu0
  %v263 = vadd.f32 0.0, %v262
  %v264 = vpop.f32.mrf.mxu0
  %v265 = vadd.f32 0.0, %v264
  %266 = vmatprep.mubr.f32.mxu0 0.0
  %267 = vmatmul.mubr.f32.gmra.mxu0 %v63
  %v268 = vpop.f32.mrf.mxu0
  %v269 = vadd.f32 0.0, %v268
  %v270 = vpop.f32.mrf.mxu0
  %v271 = vadd.f32 0.0, %v270
  %272 = vmatprep.mubr.f32.mxu0 0.0
  %273 = vmatmul.mubr.f32.gmra.mxu0 %v66
  %v274 = vpop.f32.mrf.mxu0
  %v275 = vadd.f32 0.0, %v274
  %v276 = vpop.f32.mrf.mxu0
  %v277 = vadd.f32 0.0, %v276
  %278 = vmatprep.mubr.f32.mxu0 0.0
  %279 = vmatmul.mubr.f32.gmra.mxu0 %v69
  %v280 = vpop.f32.mrf.mxu0
  %v281 = vadd.f32 0.0, %v280
  %v282 = vpop.f32.mrf.mxu0
  %v283 = vadd.f32 0.0, %v282
  %284 = vmatprep.mubr.f32.mxu0 0.0
  %285 = vmatmul.mubr.f32.gmra.mxu0 %v72
  %v286 = vpop.f32.mrf.mxu0
  %v287 = vadd.f32 0.0, %v286
  %v288 = vpop.f32.mrf.mxu0
  %v289 = vadd.f32 0.0, %v288
  %290 = vmatprep.mubr.f32.mxu0 0.0
  %291 = vmatmul.mubr.f32.gmra.mxu0 %v75
  %v292 = vpop.f32.mrf.mxu0
  %v293 = vadd.f32 0.0, %v292
  %v294 = vpop.f32.mrf.mxu0
  %v295 = vadd.f32 0.0, %v294
  %296 = vmatprep.mubr.f32.mxu0 0.0
  %297 = vmatmul.mubr.f32.gmra.mxu0 %v78
  %v298 = vpop.f32.mrf.mxu0
  %v299 = vadd.f32 0.0, %v298
  %v300 = vpop.f32.mrf.mxu0
  %v301 = vadd.f32 0.0, %v300
  %302 = vmatprep.mubr.f32.mxu0 0.0
  %303 = vmatmul.mubr.f32.gmra.mxu0 %v81
  %v304 = vpop.f32.mrf.mxu0
  %v305 = vadd.f32 0.0, %v304
  %v306 = vpop.f32.mrf.mxu0
  %v307 = vadd.f32 0.0, %v306
  %308 = vdwg.mxu0
  %v309 = vld [vmem:[%s5] sm:$0x3]
  %v311 = vlaneseq
  %v312 = vshrl.u32 %v311, 7
  %v313 = vsub.s32 0, %v312
  %v314 = vrot.slane %v309, %v313
  %v315 = vlaneseq
  %v316 = vshrl.u32 %v315, 7
  %v317 = vsub.s32 1, %v316
  %v318 = vrot.slane %v309, %v317
  %v321 = vadd.f32 %v150, %v314
  %v322 = vadd.f32 %v152, %v318
  %v323 = vadd.f32 %v156, %v314
  %v324 = vadd.f32 %v158, %v318
  %v325 = vadd.f32 %v162, %v314
  %v326 = vadd.f32 %v164, %v318
  %v327 = vadd.f32 %v168, %v314
  %v328 = vadd.f32 %v170, %v318
  %v329 = vadd.f32 %v174, %v314
  %v330 = vadd.f32 %v176, %v318
  %v331 = vadd.f32 %v180, %v314
  %v332 = vadd.f32 %v182, %v318
  %v333 = vadd.f32 %v186, %v314
  %v334 = vadd.f32 %v188, %v318
  %v335 = vadd.f32 %v192, %v314
  %v336 = vadd.f32 %v194, %v318
  %337 = vst [vmem:[#allocation2] sm:$0xff] %v321
  %338 = vst [vmem:[#allocation2 + $0x8] sm:$0xff] %v322
  %339 = vst [vmem:[#allocation2 + $0x10] sm:$0xff] %v323
  %340 = vst [vmem:[#allocation2 + $0x18] sm:$0xff] %v324
  %341 = vst [vmem:[#allocation2 + $0x20] sm:$0xff] %v325
  %342 = vst [vmem:[#allocation2 + $0x28] sm:$0xff] %v326
  %343 = vst [vmem:[#allocation2 + $0x30] sm:$0xff] %v327
  %344 = vst [vmem:[#allocation2 + $0x38] sm:$0xff] %v328
  %345 = vst [vmem:[#allocation2 + $0x40] sm:$0xff] %v329
  %346 = vst [vmem:[#allocation2 + $0x48] sm:$0xff] %v330
  %347 = vst [vmem:[#allocation2 + $0x50] sm:$0xff] %v331
  %348 = vst [vmem:[#allocation2 + $0x58] sm:$0xff] %v332
  %349 = vst [vmem:[#allocation2 + $0x60] sm:$0xff] %v333
  %350 = vst [vmem:[#allocation2 + $0x68] sm:$0xff] %v334
  %351 = vst [vmem:[#allocation2 + $0x70] sm:$0xff] %v335
  %352 = vst [vmem:[#allocation2 + $0x78] sm:$0xff] %v336
  %353 = vst [vmem:[#allocation3] sm:$0xff] %v263
  %354 = vst [vmem:[#allocation3 + $0x8] sm:$0xff] %v265
  %355 = vst [vmem:[#allocation3 + $0x10] sm:$0xff] %v269
  %356 = vst [vmem:[#allocation3 + $0x18] sm:$0xff] %v271
  %357 = vst [vmem:[#allocation3 + $0x20] sm:$0xff] %v275
  %358 = vst [vmem:[#allocation3 + $0x28] sm:$0xff] %v277
  %359 = vst [vmem:[#allocation3 + $0x30] sm:$0xff] %v281
  %360 = vst [vmem:[#allocation3 + $0x38] sm:$0xff] %v283
  %361 = vst [vmem:[#allocation3 + $0x40] sm:$0xff] %v287
  %362 = vst [vmem:[#allocation3 + $0x48] sm:$0xff] %v289
  %363 = vst [vmem:[#allocation3 + $0x50] sm:$0xff] %v293
  %364 = vst [vmem:[#allocation3 + $0x58] sm:$0xff] %v295
  %365 = vst [vmem:[#allocation3 + $0x60] sm:$0xff] %v299
  %366 = vst [vmem:[#allocation3 + $0x68] sm:$0xff] %v301
  %367 = vst [vmem:[#allocation3 + $0x70] sm:$0xff] %v305
  %368 = vst [vmem:[#allocation3 + $0x78] sm:$0xff] %v307
  %v369 = vld [vmem:[%s4] sm:$0xff]
  %v370 = vld [vmem:[%s4 + $0x8] sm:$0xff]
  %v371 = vld [vmem:[%s4 + $0x10] sm:$0xff]
  %v372 = vld [vmem:[%s4 + $0x18] sm:$0xff]
  %v373 = vld [vmem:[%s4 + $0x20] sm:$0xff]
  %v374 = vld [vmem:[%s4 + $0x28] sm:$0xff]
  %v375 = vld [vmem:[%s4 + $0x30] sm:$0xff]
  %v376 = vld [vmem:[%s4 + $0x38] sm:$0xff]
  %v377 = vld [vmem:[%s4 + $0x40] sm:$0xff]
  %v378 = vld [vmem:[%s4 + $0x48] sm:$0xff]
  %v379 = vld [vmem:[%s4 + $0x50] sm:$0xff]
  %v380 = vld [vmem:[%s4 + $0x58] sm:$0xff]
  %v381 = vld [vmem:[%s4 + $0x60] sm:$0xff]
  %v382 = vld [vmem:[%s4 + $0x68] sm:$0xff]
  %v383 = vld [vmem:[%s4 + $0x70] sm:$0xff]
  %v384 = vld [vmem:[%s4 + $0x78] sm:$0xff]
  %v385 = vld [vmem:[%s1] sm:$0xff]
  %386 = vset.pattern.permute.xlu0 0
  %387 = vperm.xlu0 %386, %v385
  %v388 = vpop.permute.xlu0 %387
  %v389 = vlaneseq
  %v390 = vand.u32 %v389, 127
  %vm391 = vcmp.lt.s32.totalorder %v390, 32
  // While loop
  $region46: #{lstm_mlp_ensemble2_forward.1} parent=0 // loop_pre_header
    _
  $region47: #{lstm_mlp_ensemble2_forward.1} parent=0 // loop_header
    %s393 = sphi 0, %s395
    %p394 = scmp.ge.s32.totalorder %s393, %s41
    %v398 = vphi 0.0, %v529
    %v399 = vphi 0.0, %v534
  $region48: #{lstm_mlp_ensemble2_forward.1} parent=0 // loop_header_branch
    %397 = sbr.rel (%p394) target = $region52
  $region49: #{lstm_mlp_ensemble2_forward.1} parent=0 // loop_body
    %s400 = ssub.s32 %s41, 1
    %s401 = ssub.s32 %s400, %s393
    %s402 = smul.u32 %s393, 8
    %s403 = sshra.s32 %s402, 3
    %s404 = sand.u32 %s402, 7
    %s405 = smul.u32 %s403, 2
    %s406 = smul.addr %s405, 8
    %s407 = scalar_lea.vmem [#allocation2], %s406
    %v408 = vld [vmem:[%s407] sm:$0xff]
    %v409 = vld [vmem:[%s407 + $0x8] sm:$0xff]
    %s410 = smul.u32 %s401, 8
    %s411 = sshra.s32 %s410, 3
    %s412 = sand.u32 %s410, 7
    %s413 = smul.u32 %s411, 2
    %s414 = smul.addr %s413, 8
    %s415 = scalar_lea.vmem [#allocation3], %s414
    %v416 = vld [vmem:[%s415] sm:$0xff]
    %v417 = vld [vmem:[%s415 + $0x8] sm:$0xff]
    %v418 = vadd.f32 %v408, %v416
    %v419 = vadd.f32 %v409, %v417
    %vm420 = vcmask 523264
    %v422 = vsel %vm420, %v398, 0
    %424 = vmatprep.subr.mxu0 0.0
    %425 = vmatpush1.msra.mxu0 0.0
    %426 = vmatprep.subr.mxu0 0.0
    %427 = vmatpush1.msra.mxu0 0.0
    %428 = vmatprep.subr.mxu0 0.0
    %429 = vmatpush1.msra.mxu0 0.0
    %430 = vmatprep.subr.mxu0 0.0
    %431 = vmatpush1.msra.mxu0 0.0
    %432 = vmatprep.subr.mxu0 0.0
    %433 = vmatpush1.msra.mxu0 0.0
    %434 = vmatprep.subr.mxu0 0.0
    %435 = vmatpush1.msra.mxu0 0.0
    %436 = vmatprep.subr.mxu0 0.0
    %437 = vmatpush1.msra.mxu0 0.0
    %438 = vmatprep.subr.mxu0 0.0
    %439 = vmatpush1.msra.mxu0 0.0
    %440 = vmatprep.subr.mxu0 %v384
    %441 = vmatpush1.msra.mxu0 %v383
    %442 = vmatprep.subr.mxu0 %v382
    %443 = vmatpush1.msra.mxu0 %v381
    %444 = vmatprep.subr.mxu0 %v380
    %445 = vmatpush1.msra.mxu0 %v379
    %446 = vmatprep.subr.mxu0 %v378
    %447 = vmatpush1.msra.mxu0 %v377
    %448 = vmatprep.subr.mxu0 %v376
    %449 = vmatpush1.msra.mxu0 %v375
    %450 = vmatprep.subr.mxu0 %v374
    %451 = vmatpush1.msra.mxu0 %v373
    %452 = vmatprep.subr.mxu0 %v372
    %453 = vmatpush1.msra.mxu0 %v371
    %454 = vmatprep.subr.mxu0 %v370
    %455 = vmatpush1.msra.mxu0 %v369
    %456 = vmatprep.subr.mxu0 0.0
    %457 = vmatpush2.msra.mxu0 0.0
    %458 = vmatprep.subr.mxu0 0.0
    %459 = vmatpush2.msra.mxu0 0.0
    %460 = vmatprep.subr.mxu0 0.0
    %461 = vmatpush2.msra.mxu0 0.0
    %462 = vmatprep.subr.mxu0 0.0
    %463 = vmatpush2.msra.mxu0 0.0
    %464 = vmatprep.subr.mxu0 0.0
    %465 = vmatpush2.msra.mxu0 0.0
    %466 = vmatprep.subr.mxu0 0.0
    %467 = vmatpush2.msra.mxu0 0.0
    %468 = vmatprep.subr.mxu0 0.0
    %469 = vmatpush2.msra.mxu0 0.0
    %470 = vmatprep.subr.mxu0 0.0
    %471 = vmatpush2.msra.mxu0 0.0
    %472 = vmatprep.subr.mxu0 0.0
    %473 = vmatpush2.msra.mxu0 0.0
    %474 = vmatprep.subr.mxu0 0.0
    %475 = vmatpush2.msra.mxu0 0.0
    %476 = vmatprep.subr.mxu0 0.0
    %477 = vmatpush2.msra.mxu0 0.0
    %478 = vmatprep.subr.mxu0 0.0
    %479 = vmatpush2.msra.mxu0 0.0
    %480 = vmatprep.subr.mxu0 0.0
    %481 = vmatpush2.msra.mxu0 0.0
    %482 = vmatprep.subr.mxu0 0.0
    %483 = vmatpush2.msra.mxu0 0.0
    %484 = vmatprep.subr.mxu0 0.0
    %485 = vmatpush2.msra.mxu0 0.0
    %486 = vmatprep.subr.mxu0 0.0
    %487 = vmatpush2.msra.mxu0 0.0
    %488 = vmatprep.mubr.f32.mxu0 0.0
    %489 = vmatmul.mubr.f32.gmra.mxu0 %v422
    %v490 = vpop.f32.mrf.mxu0
    %v491 = vadd.f32 %v418, %v490
    %v492 = vpop.f32.mrf.mxu0
    %v493 = vadd.f32 %v419, %v492
    %494 = vdwg.mxu0
    %v495 = vxor.u32 %v491, 2147483648
    %v496 = vmul.f32 %v495, 1.442695
    %v497 = vpow.pop %v496
    %v498 = vadd.f32 %v497, 1.0
    %v499 = vrcp.pop %v498
    %v500 = vmul.f32 1.0, %v499
    %v501 = vtanh.pop %v493
    %v502 = vxor.u32 %v493, 2147483648
    %v503 = vmul.f32 %v502, 1.442695
    %v504 = vpow.pop %v503
    %v505 = vadd.f32 %v504, 1.0
    %v506 = vrcp.pop %v505
    %v507 = vmul.f32 1.0, %v506
    %509 = vrot.lane.b32.xlu0 %v399, 64
    %v510 = vpop.permute.xlu0 %509
    %v512 = vmul.f32 %v500, %v510
    %v513 = vmul.f32 %v500, %v501
    %515 = vrot.lane.b32.xlu0 %v513, 64
    %v516 = vpop.permute.xlu0 %515
    %v518 = vadd.f32 %v512, %v516
    %v519 = vtanh.pop %v518
    %v520 = vmul.f32 %v507, %v519
    %v521 = vstv %s393
    %v522 = vstv %s401
    %v523 = vsel %vm391, %v521, %v522
    %vm524 = vcmp.lt.s32.totalorder %v523, %v388
    %526 = vrot.lane.b32.xlu0 %v520, 64
    %v527 = vpop.permute.xlu0 %526
    %v529 = vsel %vm524, %v527, %v398
    %531 = vrot.lane.b32.xlu0 %v518, 64
    %v532 = vpop.permute.xlu0 %531
    %v534 = vsel %vm524, %v532, %v399
  $region50: #{lstm_mlp_ensemble2_forward.1} parent=0 // loop_footer
    %s395 = sadd.s32 %s393, 1
  $region51: #{lstm_mlp_ensemble2_forward.1} parent=0 // loop_footer_branch
    %392 = sbr.rel target = $region47
  $region52: #{lstm_mlp_ensemble2_forward.1} parent=0 // loop_exit
    _
  %v535 = vld [vmem:[%s7] sm:$0xff]
  %v536 = vld [vmem:[%s7 + $0x8] sm:$0xff]
  %v537 = vld [vmem:[%s7 + $0x10] sm:$0xff]
  %v538 = vld [vmem:[%s7 + $0x18] sm:$0xff]
  %v539 = vld [vmem:[%s7 + $0x20] sm:$0xff]
  %v540 = vld [vmem:[%s7 + $0x28] sm:$0xff]
  %v541 = vld [vmem:[%s7 + $0x30] sm:$0xff]
  %v542 = vld [vmem:[%s7 + $0x38] sm:$0xff]
  %v543 = vld [vmem:[%s6] sm:$0xff]
  %v544 = vld [vmem:[%s7 + $0x40] sm:$0xff]
  %v545 = vld [vmem:[%s7 + $0x48] sm:$0xff]
  %v546 = vld [vmem:[%s7 + $0x50] sm:$0xff]
  %v547 = vld [vmem:[%s7 + $0x58] sm:$0xff]
  %vm548 = vcmask 261120
  %v550 = vsel %vm548, %v543, 0
  %552 = vmatprep.subr.mxu0 0.0
  %553 = vmatpush1.msra.mxu0 0.0
  %554 = vmatprep.subr.mxu0 0.0
  %555 = vmatpush1.msra.mxu0 0.0
  %556 = vmatprep.subr.mxu0 0.0
  %557 = vmatpush1.msra.mxu0 0.0
  %558 = vmatprep.subr.mxu0 0.0
  %559 = vmatpush1.msra.mxu0 0.0
  %560 = vmatprep.subr.mxu0 0.0
  %561 = vmatpush1.msra.mxu0 0.0
  %562 = vmatprep.subr.mxu0 0.0
  %563 = vmatpush1.msra.mxu0 0.0
  %564 = vmatprep.subr.mxu0 0.0
  %565 = vmatpush1.msra.mxu0 0.0
  %566 = vmatprep.subr.mxu0 0.0
  %567 = vmatpush1.msra.mxu0 0.0
  %568 = vmatprep.subr.mxu0 0.0
  %569 = vmatpush1.msra.mxu0 0.0
  %570 = vmatprep.subr.mxu0 0.0
  %571 = vmatpush1.msra.mxu0 0.0
  %572 = vmatprep.subr.mxu0 0.0
  %573 = vmatpush1.msra.mxu0 0.0
  %574 = vmatprep.subr.mxu0 0.0
  %575 = vmatpush1.msra.mxu0 0.0
  %576 = vmatprep.subr.mxu0 0.0
  %577 = vmatpush1.msra.mxu0 %v547
  %578 = vmatprep.subr.mxu0 0.0
  %579 = vmatpush1.msra.mxu0 %v546
  %580 = vmatprep.subr.mxu0 0.0
  %581 = vmatpush1.msra.mxu0 %v545
  %582 = vmatprep.subr.mxu0 0.0
  %583 = vmatpush1.msra.mxu0 %v544
  %584 = vmatprep.subr.mxu0 0.0
  %585 = vmatpush2.msra.mxu0 0.0
  %586 = vmatprep.subr.mxu0 0.0
  %587 = vmatpush2.msra.mxu0 0.0
  %588 = vmatprep.subr.mxu0 0.0
  %589 = vmatpush2.msra.mxu0 0.0
  %590 = vmatprep.subr.mxu0 0.0
  %591 = vmatpush2.msra.mxu0 0.0
  %592 = vmatprep.subr.mxu0 0.0
  %593 = vmatpush2.msra.mxu0 0.0
  %594 = vmatprep.subr.mxu0 0.0
  %595 = vmatpush2.msra.mxu0 0.0
  %596 = vmatprep.subr.mxu0 0.0
  %597 = vmatpush2.msra.mxu0 0.0
  %598 = vmatprep.subr.mxu0 0.0
  %599 = vmatpush2.msra.mxu0 0.0
  %600 = vmatprep.subr.mxu0 0.0
  %601 = vmatpush2.msra.mxu0 0.0
  %602 = vmatprep.subr.mxu0 0.0
  %603 = vmatpush2.msra.mxu0 0.0
  %604 = vmatprep.subr.mxu0 0.0
  %605 = vmatpush2.msra.mxu0 0.0
  %606 = vmatprep.subr.mxu0 0.0
  %607 = vmatpush2.msra.mxu0 0.0
  %608 = vmatprep.subr.mxu0 0.0
  %609 = vmatpush2.msra.mxu0 0.0
  %610 = vmatprep.subr.mxu0 0.0
  %611 = vmatpush2.msra.mxu0 0.0
  %612 = vmatprep.subr.mxu0 0.0
  %613 = vmatpush2.msra.mxu0 0.0
  %614 = vmatprep.subr.mxu0 0.0
  %615 = vmatpush2.msra.mxu0 0.0
  %616 = vmatprep.mubr.f32.mxu0 0.0
  %617 = vmatmul.mubr.f32.gmra.mxu0 %v550
  %v618 = vpop.f32.mrf.mxu0
  %v619 = vadd.f32 0.0, %v618
  %v620 = vpop.f32.mrf.mxu0
  %621 = vdwg.mxu0
  %vm622 = vcmask 523264
  %v624 = vsel %vm622, %v398, 0
  %626 = vmatprep.subr.mxu0 0.0
  %627 = vmatpush1.msra.mxu0 0.0
  %628 = vmatprep.subr.mxu0 0.0
  %629 = vmatpush1.msra.mxu0 0.0
  %630 = vmatprep.subr.mxu0 0.0
  %631 = vmatpush1.msra.mxu0 0.0
  %632 = vmatprep.subr.mxu0 0.0
  %633 = vmatpush1.msra.mxu0 0.0
  %634 = vmatprep.subr.mxu0 0.0
  %635 = vmatpush1.msra.mxu0 0.0
  %636 = vmatprep.subr.mxu0 0.0
  %637 = vmatpush1.msra.mxu0 0.0
  %638 = vmatprep.subr.mxu0 0.0
  %639 = vmatpush1.msra.mxu0 0.0
  %640 = vmatprep.subr.mxu0 0.0
  %641 = vmatpush1.msra.mxu0 0.0
  %642 = vmatprep.subr.mxu0 0.0
  %643 = vmatpush1.msra.mxu0 %v542
  %644 = vmatprep.subr.mxu0 0.0
  %645 = vmatpush1.msra.mxu0 %v541
  %646 = vmatprep.subr.mxu0 0.0
  %647 = vmatpush1.msra.mxu0 %v540
  %648 = vmatprep.subr.mxu0 0.0
  %649 = vmatpush1.msra.mxu0 %v539
  %650 = vmatprep.subr.mxu0 0.0
  %651 = vmatpush1.msra.mxu0 %v538
  %652 = vmatprep.subr.mxu0 0.0
  %653 = vmatpush1.msra.mxu0 %v537
  %654 = vmatprep.subr.mxu0 0.0
  %655 = vmatpush1.msra.mxu0 %v536
  %656 = vmatprep.subr.mxu0 0.0
  %657 = vmatpush1.msra.mxu0 %v535
  %658 = vmatprep.subr.mxu0 0.0
  %659 = vmatpush2.msra.mxu0 0.0
  %660 = vmatprep.subr.mxu0 0.0
  %661 = vmatpush2.msra.mxu0 0.0
  %662 = vmatprep.subr.mxu0 0.0
  %663 = vmatpush2.msra.mxu0 0.0
  %664 = vmatprep.subr.mxu0 0.0
  %665 = vmatpush2.msra.mxu0 0.0
  %666 = vmatprep.subr.mxu0 0.0
  %667 = vmatpush2.msra.mxu0 0.0
  %668 = vmatprep.subr.mxu0 0.0
  %669 = vmatpush2.msra.mxu0 0.0
  %670 = vmatprep.subr.mxu0 0.0
  %671 = vmatpush2.msra.mxu0 0.0
  %672 = vmatprep.subr.mxu0 0.0
  %673 = vmatpush2.msra.mxu0 0.0
  %674 = vmatprep.subr.mxu0 0.0
  %675 = vmatpush2.msra.mxu0 0.0
  %676 = vmatprep.subr.mxu0 0.0
  %677 = vmatpush2.msra.mxu0 0.0
  %678 = vmatprep.subr.mxu0 0.0
  %679 = vmatpush2.msra.mxu0 0.0
  %680 = vmatprep.subr.mxu0 0.0
  %681 = vmatpush2.msra.mxu0 0.0
  %682 = vmatprep.subr.mxu0 0.0
  %683 = vmatpush2.msra.mxu0 0.0
  %684 = vmatprep.subr.mxu0 0.0
  %685 = vmatpush2.msra.mxu0 0.0
  %686 = vmatprep.subr.mxu0 0.0
  %687 = vmatpush2.msra.mxu0 0.0
  %688 = vmatprep.subr.mxu0 0.0
  %689 = vmatpush2.msra.mxu0 0.0
  %690 = vmatprep.mubr.f32.mxu0 0.0
  %691 = vmatmul.mubr.f32.gmra.mxu0 %v624
  %v692 = vpop.f32.mrf.mxu0
  %v693 = vadd.f32 %v619, %v692
  %v694 = vpop.f32.mrf.mxu0
  %695 = vdwg.mxu0
  %v696 = vld [vmem:[%s8] sm:$0x1]
  %v698 = vlaneseq
  %v699 = vshrl.u32 %v698, 7
  %v700 = vsub.s32 0, %v699
  %v701 = vrot.slane %v696, %v700
  %v703 = vadd.f32 %v693, %v701
  %v704 = vmax.f32 %v703, 0.0
  %v705 = vld [vmem:[%s9] sm:$0x1]
  %v707 = vlaneseq
  %v708 = vshrl.u32 %v707, 7
  %v709 = vsub.s32 0, %v708
  %v710 = vrot.slane %v705, %v709
  %v712 = vmul.f32 %v704, %v710
  %v713 = vsel %vm548, %v712, 0.0
  %714 = vadd.xlane.f32.xlu0 %v713
  %v715 = vpop.xlane.xlu0 %714
  %v716 = vld [vmem:[#allocation5] sm:$0x1]
  %v718 = vlaneseq
  %v719 = vshrl.u32 %v718, 7
  %v720 = vsub.s32 0, %v719
  %v721 = vrot.slane %v716, %v720
  %v723 = vadd.f32 %v715, %v721
  %vm724 = vcmask 7168
  %725 = vst.msk [vmem:[%s11] sm:$0xff] %vm724, %v723
  // Predicated region
  $region53: #{lstm_mlp_ensemble2_forward.1} parent=0 // pred_check
    _
  $region54: #{lstm_mlp_ensemble2_forward.1} parent=0 // pred_check_branch
    %727 = sbr.rel (0) target = $region56
  $region55: #{lstm_mlp_ensemble2_forward.1} parent=0 // pred_region
    _
  $region56: #{lstm_mlp_ensemble2_forward.1} parent=0 // pred_fallthru
    _
  // Predicated region
  $region57: #{lstm_mlp_ensemble2_forward.1} parent=0 // pred_check
    _
  $region58: #{lstm_mlp_ensemble2_forward.1} parent=0 // pred_check_branch
    %729 = sbr.rel (0) target = $region60
  $region59: #{lstm_mlp_ensemble2_forward.1} parent=0 // pred_region
    _
  $region60: #{lstm_mlp_ensemble2_forward.1} parent=0 // pred_fallthru
    _

</llo_original>
